<compile_context>
chip_gen: v5e
topology: v5e:2x2
jax: 0.10.0
libtpu: 0.0.40
codegen_flags: <defaults>
</compile_context>

<pallas_src>
import jax
import jax.numpy as jnp
from jax.experimental import pallas as pl
from jax.experimental.pallas import tpu as pltpu

NUM_GROUPS = 32
EPS = 1e-6


def _choose_spatial_tile(hw, target, min_tiles=1):
    """Largest multiple of 128 dividing hw, <= target, yielding >= min_tiles tiles.
    Falls back to the full extent (single tile) for awkward hw."""
    cap = min(target, hw if min_tiles <= 1 else hw // min_tiles)
    t = (cap // 128) * 128
    while t >= 128:
        if hw % t == 0:
            return t
        t -= 128
    return hw


# --------------------------------------------------------------------------------------
# Kernel 1: fused GroupNorm affine + fused q|k|v 1x1 projection (channel-major)
# --------------------------------------------------------------------------------------
def _norm_qkv_kernel(x_ref, scale_ref, shift_ref, w_ref, b_ref, qkv_ref):
    # x_ref: (1, C, TT) f32; scale/shift: (1, C, 1) f32; w: (3C, C) bf16; b: (3C, 1) f32
    h = x_ref[0] * scale_ref[0] + shift_ref[0]                 # (C, TT) f32 GroupNorm affine
    h16 = h.astype(jnp.bfloat16)                               # bf16 MXU input, f32 accumulate
    qkv = jnp.dot(w_ref[...], h16,
                  preferred_element_type=jnp.float32) + b_ref[...]   # (3C, TT) f32
    qkv_ref[0] = qkv.astype(jnp.bfloat16)


# --------------------------------------------------------------------------------------
# Kernel 2: attention (K/V VMEM-resident per batch) + output projection + residual
# --------------------------------------------------------------------------------------
def _attn_proj_kernel(q_ref, k_ref, v_ref, x_ref, wp_ref, bp_ref, o_ref):
    q = q_ref[0]                                               # (C, TQ) bf16, pre-scaled by C**-0.5
    k = k_ref[0]                                               # (C, HW) bf16, resident per batch
    v = v_ref[0]                                               # (C, HW) bf16, resident per batch
    # logits: contract the channel dim of q and k -> (TQ, HW), f32 accumulation on the MXU
    s = jax.lax.dot_general(q, k, (((0,), (0,)), ((), ())),
                            preferred_element_type=jnp.float32)
    m = jnp.max(s, axis=-1, keepdims=True)                     # (TQ, 1)
    p = jnp.exp(s - m)                                         # f32 exp (exact on all gens)
    l = jnp.sum(p, axis=-1, keepdims=True)                     # (TQ, 1)
    p = p * (1.0 / l)                                          # exact normalization
    # attention output: contract the key (spatial) dim -> (C, TQ)
    h = jax.lax.dot_general(v, p.astype(jnp.bfloat16), (((1,), (1,)), ((), ())),
                            preferred_element_type=jnp.float32)
    out = jnp.dot(wp_ref[...], h.astype(jnp.bfloat16),
                  preferred_element_type=jnp.float32) + bp_ref[...]
    o_ref[0] = x_ref[0] + out                                  # residual add in f32


# --------------------------------------------------------------------------------------
# Wrapper
# --------------------------------------------------------------------------------------
def attn_block(x_nchw, params, *, tt_target=512, tq_target=512):
    """x_nchw: (B, C, H, W) float32. params: dict of weights (torch 1x1-conv layout)."""
    B, C, H, W = x_nchw.shape
    HW = H * W
    assert C % NUM_GROUPS == 0, "GroupNorm(32) requires channels divisible by 32"
    cg = C // NUM_GROUPS

    # Channel-major view (no transpose, free reshape).
    x = x_nchw.reshape(B, C, HW).astype(jnp.float32)

    # ---- GroupNorm statistics: one fused pass (E[x], E[x^2]) per (batch, group) ----
    xg = x.reshape(B, NUM_GROUPS, cg * HW)
    mean_g = jnp.mean(xg, axis=-1)                              # (B, G)
    mean_sq_g = jnp.mean(xg * xg, axis=-1)                      # fused into the same pass
    var_g = mean_sq_g - mean_g * mean_g
    inv_g = jax.lax.rsqrt(var_g + EPS)
    mean_c = jnp.repeat(mean_g, cg, axis=1)                     # (B, C)
    inv_c = jnp.repeat(inv_g, cg, axis=1)                       # (B, C)
    gamma = params["gamma"].astype(jnp.float32)[None, :]
    beta = params["beta"].astype(jnp.float32)[None, :]
    nscale = (inv_c * gamma)[:, :, None]                        # (B, C, 1)
    nshift = (beta - mean_c * inv_c * gamma)[:, :, None]        # (B, C, 1)

    # ---- fused q|k|v weight (3C, C) bf16 and bias (3C, 1) f32; fold C**-0.5 into q ----
    sm_scale = float(C) ** (-0.5)
    w_qkv = jnp.concatenate(
        [params["wq"].astype(jnp.float32) * sm_scale,
         params["wk"].astype(jnp.float32),
         params["wv"].astype(jnp.float32)], axis=0).astype(jnp.bfloat16)      # (3C, C)
    b_qkv = jnp.concatenate(
        [params["bq"].astype(jnp.float32) * sm_scale,
         params["bk"].astype(jnp.float32),
         params["bv"].astype(jnp.float32)], axis=0)[:, None]                  # (3C, 1)
    wp = params["wp"].astype(jnp.bfloat16)                                    # (C, C)
    bp = params["bp"].astype(jnp.float32)[:, None]                            # (C, 1)

    # Keep >= 2 spatial tiles when B == 1 so both v7x TensorCores get work.
    min_tiles = 2 if B == 1 else 1
    tt = _choose_spatial_tile(HW, tt_target, min_tiles)
    tq = _choose_spatial_tile(HW, tq_target, min_tiles)

    # ------------------ kernel 1: GroupNorm affine + fused q/k/v projection -------------
    x_spec1 = pl.BlockSpec((1, C, tt), lambda b, t: (b, 0, t))
    stat_spec = pl.BlockSpec((1, C, 1), lambda b, t: (b, 0, 0))
    wqkv_spec = pl.BlockSpec((3 * C, C), lambda b, t: (0, 0))        # fetched once
    bqkv_spec = pl.BlockSpec((3 * C, 1), lambda b, t: (0, 0))
    qkv_spec = pl.BlockSpec((1, 3 * C, tt), lambda b, t: (b, 0, t))

    vmem1 = (2 * C * tt * 4            # x tile (double-buffered)
             + 4 * C * 4               # scale/shift
             + 2 * 3 * C * C * 2       # fused weight
             + 2 * 3 * C * 4           # fused bias
             + 2 * 3 * C * tt * 2)     # qkv output tile
    qkv = pl.pallas_call(
        _norm_qkv_kernel,
        out_shape=jax.ShapeDtypeStruct((B, 3 * C, HW), jnp.bfloat16),
        grid=(B, HW // tt),
        in_specs=[x_spec1, stat_spec, stat_spec, wqkv_spec, bqkv_spec],
        out_specs=qkv_spec,
        compiler_params=pltpu.CompilerParams(
            dimension_semantics=("parallel", "parallel"),
            vmem_limit_bytes=int(min(max(2 * vmem1, 16 << 20), 48 << 20))),
        cost_estimate=pl.CostEstimate(
            flops=int(6 * B * HW * C * C),
            transcendentals=0,
            bytes_accessed=int(B * C * HW * 4 + 3 * B * C * HW * 2 + 3 * C * C * 2)),
    )(x, nscale, nshift, w_qkv, b_qkv)

    # ------------------ kernel 2: attention (resident K/V) + proj_out + residual --------
    q_spec = pl.BlockSpec((1, C, tq), lambda b, qi: (b, 0, qi))      # q rows [0, C)
    k_spec = pl.BlockSpec((1, C, HW), lambda b, qi: (b, 1, 0))       # k rows [C, 2C), 1 DMA / batch
    v_spec = pl.BlockSpec((1, C, HW), lambda b, qi: (b, 2, 0))       # v rows [2C, 3C), 1 DMA / batch
    x_spec2 = pl.BlockSpec((1, C, tq), lambda b, qi: (b, 0, qi))
    wp_spec = pl.BlockSpec((C, C), lambda b, qi: (0, 0))
    bp_spec = pl.BlockSpec((C, 1), lambda b, qi: (0, 0))
    o_spec = pl.BlockSpec((1, C, tq), lambda b, qi: (b, 0, qi))

    vmem2 = (2 * C * tq * 2            # q tile
             + 2 * 2 * C * HW * 2      # resident K, V (budgeted double-buffered)
             + 2 * C * tq * 4          # x residual tile
             + 2 * C * C * 2 + 2 * C * 4
             + 2 * C * tq * 4          # output tile
             + tq * HW * 8)            # logits f32 + probs bf16
    out = pl.pallas_call(
        _attn_proj_kernel,
        out_shape=jax.ShapeDtypeStruct((B, C, HW), jnp.float32),
        grid=(B, HW // tq),
        in_specs=[q_spec, k_spec, v_spec, x_spec2, wp_spec, bp_spec],
        out_specs=o_spec,
        compiler_params=pltpu.CompilerParams(
            dimension_semantics=("parallel", "parallel"),
            vmem_limit_bytes=int(min(max(2 * vmem2, 16 << 20), 48 << 20))),
        cost_estimate=pl.CostEstimate(
            flops=int(B * (4 * HW * HW * C + 2 * HW * C * C)),
            transcendentals=int(B * HW * HW),
            bytes_accessed=int(3 * B * C * HW * 2 + 2 * B * C * HW * 4 + C * C * 2)),
    )(qkv, qkv, qkv, x, wp, bp)

    return out.reshape(B, C, H, W)


# --------------------------------------------------------------------------------------
# Pure-JAX reference mirroring the PyTorch forward exactly (NCHW, high precision)
# --------------------------------------------------------------------------------------
def attn_block_reference(x, p):
    B, C, H, W = x.shape
    cg = C // NUM_GROUPS
    hp = jax.lax.Precision.HIGHEST
    xr = x.reshape(B, NUM_GROUPS, cg, H, W)
    mean = xr.mean(axis=(2, 3, 4), keepdims=True)
    var = xr.var(axis=(2, 3, 4), keepdims=True)
    hn = ((xr - mean) / jnp.sqrt(var + EPS)).reshape(B, C, H, W)
    hn = hn * p["gamma"][None, :, None, None] + p["beta"][None, :, None, None]

    def conv1(h, w_, b_):
        return jnp.einsum("bchw,oc->bohw", h, w_, precision=hp) + b_[None, :, None, None]

    q = conv1(hn, p["wq"], p["bq"])
    k = conv1(hn, p["wk"], p["bk"])
    v = conv1(hn, p["wv"], p["bv"])
    q = jnp.transpose(q.reshape(B, C, H * W), (0, 2, 1))
    k = k.reshape(B, C, H * W)
    w_ = jnp.einsum("bic,bcj->bij", q, k, precision=hp) * (int(C) ** (-0.5))
    w_ = jax.nn.softmax(w_, axis=2)
    v = v.reshape(B, C, H * W)
    h_ = jnp.einsum("bcj,bij->bci", v, w_, precision=hp)
    h_ = h_.reshape(B, C, H, W)
    h_ = conv1(h_, p["wp"], p["bp"])
    return x + h_


if __name__ == "__main__":
    # HW = 256 fills the lane axis in channel-major layout; B=2 gives two parallel programs.
    B, C, H, W = 2, 128, 16, 16
    key = jax.random.PRNGKey(0)
    keys = jax.random.split(key, 7)

    x = jax.random.normal(keys[0], (B, C, H, W), dtype=jnp.float32)

    def conv_init(k):
        kw, kb = jax.random.split(k)
        w = jax.random.normal(kw, (C, C), dtype=jnp.float32) * (1.0 / jnp.sqrt(C))
        b = jax.random.normal(kb, (C,), dtype=jnp.float32) * 0.01
        return w, b

    wq, bq = conv_init(keys[1])
    wk, bk = conv_init(keys[2])
    wv, bv = conv_init(keys[3])
    wp, bp = conv_init(keys[4])
    gamma = 1.0 + 0.1 * jax.random.normal(keys[5], (C,), dtype=jnp.float32)
    beta = 0.1 * jax.random.normal(keys[6], (C,), dtype=jnp.float32)

    params = dict(gamma=gamma, beta=beta,
                  wq=wq, bq=bq, wk=wk, bk=bk, wv=wv, bv=bv, wp=wp, bp=bp)

    out = jax.block_until_ready(attn_block(x, params))
    ref = jax.block_until_ready(attn_block_reference(x, params))

    assert out.shape == (B, C, H, W)
    # Matmul inputs are bf16 (f32 accumulation); tolerance is a few bf16 ulps of O(1) values.
    max_err = float(jnp.max(jnp.abs(out - ref)))
    assert max_err < 5e-2, f"mismatch vs reference: {max_err}"

    print("KERNEL_OK")
</pallas_src>

<mosaic_0001>
module attributes {stable_mosaic.version = 11 : i64} {
  func.func @_norm_qkv_kernel(%arg0: i32, %arg1: i32, %arg2: memref<1x128x256xf32, #tpu.memory_space<vmem>>, %arg3: memref<1x128x1xf32, #tpu.memory_space<vmem>>, %arg4: memref<1x128x1xf32, #tpu.memory_space<vmem>>, %arg5: memref<384x128xbf16, #tpu.memory_space<vmem>>, %arg6: memref<384x1xf32, #tpu.memory_space<vmem>>, %arg7: memref<1x384x256xbf16, #tpu.memory_space<vmem>>) attributes {dimension_semantics = [#tpu.dimension_semantics<parallel>, #tpu.dimension_semantics<parallel>], iteration_bounds = array<i64: 2, 1>, scalar_prefetch = 0 : i64, scratch_operands = 0 : i64, tpu.core_type = #tpu.core_type<tc>, window_params = [{transform_indices = @transform_0, window_bounds = array<i64: 1, 128, 256>}, {transform_indices = @transform_1, window_bounds = array<i64: 1, 128, 1>}, {transform_indices = @transform_2, window_bounds = array<i64: 1, 128, 1>}, {pipeline_mode = #tpu.pipeline_mode<synchronous>, transform_indices = @transform_3, window_bounds = array<i64: 384, 128>}, {pipeline_mode = #tpu.pipeline_mode<synchronous>, transform_indices = @transform_4, window_bounds = array<i64: 384, 1>}, {transform_indices = @transform_5, window_bounds = array<i64: 1, 384, 256>}]} {
    %c0 = arith.constant 0 : index
    %c0_0 = arith.constant 0 : index
    %c0_1 = arith.constant 0 : index
    %0 = vector.load %arg2[%c0, %c0_0, %c0_1] : memref<1x128x256xf32, #tpu.memory_space<vmem>>, vector<1x128x256xf32>
    %1 = vector.shape_cast %0 : vector<1x128x256xf32> to vector<128x256xf32>
    %c0_2 = arith.constant 0 : index
    %c0_3 = arith.constant 0 : index
    %c0_4 = arith.constant 0 : index
    %2 = vector.load %arg3[%c0_2, %c0_3, %c0_4] : memref<1x128x1xf32, #tpu.memory_space<vmem>>, vector<1x128x1xf32>
    %3 = vector.shape_cast %2 : vector<1x128x1xf32> to vector<128x1xf32>
    %4 = vector.broadcast %3 : vector<128x1xf32> to vector<128x256xf32>
    %5 = arith.mulf %1, %4 : vector<128x256xf32>
    %c0_5 = arith.constant 0 : index
    %c0_6 = arith.constant 0 : index
    %c0_7 = arith.constant 0 : index
    %6 = vector.load %arg4[%c0_5, %c0_6, %c0_7] : memref<1x128x1xf32, #tpu.memory_space<vmem>>, vector<1x128x1xf32>
    %7 = vector.shape_cast %6 : vector<1x128x1xf32> to vector<128x1xf32>
    %8 = vector.broadcast %7 : vector<128x1xf32> to vector<128x256xf32>
    %9 = arith.addf %5, %8 : vector<128x256xf32>
    %10 = arith.truncf %9 : vector<128x256xf32> to vector<128x256xbf16>
    %c0_8 = arith.constant 0 : index
    %c0_9 = arith.constant 0 : index
    %11 = vector.load %arg5[%c0_8, %c0_9] : memref<384x128xbf16, #tpu.memory_space<vmem>>, vector<384x128xbf16>
    %cst = arith.constant dense<0.000000e+00> : vector<384x256xf32>
    %12 = tpu.matmul %11, %10, %cst {dimension_numbers = #tpu.dot_dimension_numbers<[1], [0], [0], [1], [0, 0, 1, 1], [], []>} : vector<384x128xbf16>, vector<128x256xbf16>, vector<384x256xf32> -> vector<384x256xf32>
    %c0_10 = arith.constant 0 : index
    %c0_11 = arith.constant 0 : index
    %13 = vector.load %arg6[%c0_10, %c0_11] : memref<384x1xf32, #tpu.memory_space<vmem>>, vector<384x1xf32>
    %14 = vector.broadcast %13 : vector<384x1xf32> to vector<384x256xf32>
    %15 = arith.addf %12, %14 : vector<384x256xf32>
    %16 = arith.truncf %15 : vector<384x256xf32> to vector<384x256xbf16>
    %c0_12 = arith.constant 0 : index
    %c0_13 = arith.constant 0 : index
    %c0_14 = arith.constant 0 : index
    %17 = vector.load %arg7[%c0_12, %c0_13, %c0_14] : memref<1x384x256xbf16, #tpu.memory_space<vmem>>, vector<1x384x256xbf16>
    %18 = vector.shape_cast %17 : vector<1x384x256xbf16> to vector<384x256xbf16>
    %19 = vector.shape_cast %16 : vector<384x256xbf16> to vector<1x384x256xbf16>
    tpu.vector_store %arg7[%c0_12, %c0_13, %c0_14], %19 {strides = array<i32>} : memref<1x384x256xbf16, #tpu.memory_space<vmem>>, vector<1x384x256xbf16>,
    return
  }
  func.func @transform_0(%arg0: i32, %arg1: i32) -> (i32, i32, i32) {
    %c0_i32 = arith.constant 0 : i32
    %c0_i32_0 = arith.constant 0 : i32
    return %arg0, %c0_i32, %arg1 : i32, i32, i32
  }
  func.func @transform_1(%arg0: i32, %arg1: i32) -> (i32, i32, i32) {
    %c0_i32 = arith.constant 0 : i32
    %c0_i32_0 = arith.constant 0 : i32
    %c0_i32_1 = arith.constant 0 : i32
    return %arg0, %c0_i32, %c0_i32_0 : i32, i32, i32
  }
  func.func @transform_2(%arg0: i32, %arg1: i32) -> (i32, i32, i32) {
    %c0_i32 = arith.constant 0 : i32
    %c0_i32_0 = arith.constant 0 : i32
    %c0_i32_1 = arith.constant 0 : i32
    return %arg0, %c0_i32, %c0_i32_0 : i32, i32, i32
  }
  func.func @transform_3(%arg0: i32, %arg1: i32) -> (i32, i32) {
    %c0_i32 = arith.constant 0 : i32
    %c0_i32_0 = arith.constant 0 : i32
    %c0_i32_1 = arith.constant 0 : i32
    return %c0_i32, %c0_i32_0 : i32, i32
  }
  func.func @transform_4(%arg0: i32, %arg1: i32) -> (i32, i32) {
    %c0_i32 = arith.constant 0 : i32
    %c0_i32_0 = arith.constant 0 : i32
    %c0_i32_1 = arith.constant 0 : i32
    return %c0_i32, %c0_i32_0 : i32, i32
  }
  func.func @transform_5(%arg0: i32, %arg1: i32) -> (i32, i32, i32) {
    %c0_i32 = arith.constant 0 : i32
    %c0_i32_0 = arith.constant 0 : i32
    return %arg0, %c0_i32, %arg1 : i32, i32, i32
  }
}

</mosaic_0001>

<llo_original>
// kernel: tpu_custom_call.1
$region0: #{tpu_custom_call.1}
  #allocation0 [shape = 'u32[]', space=smem, size = 0x4, offset = 0x4, fixed_abs, tag = 'smem constant byte address 0x4 - core index']
  #allocation1 [shape = 'u32[72,128]{1,0:T(1,128)}', space=vmem, size = 0x9000, scoped, tag = 'internal scratch']
  %s0 = inlined_call_operand.vmem [shape: f32[2,128,256], index: 0, kind: input, shape index: {}]
  %s1 = inlined_call_operand.vmem [shape: f32[2,128,1], index: 1, kind: input, shape index: {}]
  %s2 = inlined_call_operand.vmem [shape: f32[2,128,1], index: 2, kind: input, shape index: {}]
  %s3 = inlined_call_operand.vmem [shape: bf16[384,128], index: 3, kind: input, shape index: {}]
  %s4 = inlined_call_operand.vmem [shape: f32[384,1], index: 4, kind: input, shape index: {}]
  %s5 = inlined_call_operand.hbm [shape: bf16[2,384,256], index: 5, kind: output, shape index: {}]
  %s6 = sld [smem:[#allocation0]]
  $region53: #{tpu_custom_call.1} parent=0
    _
  %s8 = ssub.s32 1, %s6
  %s9 = scalar_select 0, %s8, %s6
  $region1: #{tpu_custom_call.1} parent=0
    #allocation2 [shape = 'u8[393216]{0}', space=vmem, size = 0x60000, scoped, tag = 'output window, operand 0']
    #allocation3 [shape = 's32[2]{0}', space=sflag, size = 0x8, scoped, tag = 'scoped memory for tpu_custom_call.1']
    %10 = vsyncpa [#allocation3], 0
    %s11 = scalar_lea.sflag [#allocation3], 1
    %12 = vsyncpa %s11, 0
    loop: start=0, step=1, limit=4
    $region2: #{tpu_custom_call.1} parent=1 // loop_pre_header
      _
    $region3: #{tpu_custom_call.1} parent=1 // loop_header
      %s14 = sphi 0, %s18
      %p15 = scmp.ge.s32.totalorder %s14, 4
      %s21 = sphi 0, %s33
      %s22 = sphi 0, %s29
      %s23 = sphi 0, %s21
      %s24 = sphi 0, %s22
      %s25 = sphi 0, %s23
      %s26 = sphi 0, %s24
      %s38 = sphi 0, %s40
      %s41 = sphi 0, %s38
      %s42 = sphi 0, %s41
      %s58 = sphi 0, %s42
      %s64 = sphi 0, %s66
      %s67 = sphi 0, %s64
      %s68 = sphi 0, %s67
      %s84 = sphi 0, %s68
      %s90 = sphi 0, %s92
      %s93 = sphi 0, %s90
      %s94 = sphi 0, %s93
      %s110 = sphi 0, %s94
      %s114 = sphi 0, %s114
      %s116 = sphi 0, %s114
      %s117 = sphi 0, %s116
      %s131 = sphi 0, %s117
      %s135 = sphi 0, %s135
      %s137 = sphi 0, %s135
      %s138 = sphi 0, %s137
      %s152 = sphi 0, %s138
      %s160 = sphi 0, %s162
      %s163 = sphi 0, %s160
      %s164 = sphi 0, %s163
      %s180 = sphi 0, %s164
    $region4: #{tpu_custom_call.1} parent=1 // loop_header_branch
      %17 = sbr.rel (%p15) target = $region8
    $region5: #{tpu_custom_call.1} parent=1 // loop_body
      %s19 = ssub.s32 %s14, 1
      %s20 = ssub.s32 %s14, 2
      %s27 = sadd.s32 1, %s22
      %p28 = scmp.ge.s32.totalorder %s27, 1
      %s29 = scalar_select %p28, 0, %s27
      %s30 = sadd.s32 1, %s21
      %s31 = scalar_select %p28, %s30, %s21
      %p32 = scmp.ge.s32.totalorder %s31, 2
      %s33 = scalar_select %p32, 0, %s31
      %s34 = ssub.s32 %s21, %s33
      %s35 = ssub.s32 %s22, %s29
      %s36 = sor.u32 %s34, %s35
      %p37 = scmp.eq.s32.totalorder %s36, 0
      %s39 = sadd.s32 %s38, 1
      %s40 = scalar_select %p37, %s38, %s39
      %p43 = pneg %p37
      %p44 = scmp.eq.s32.totalorder %s14, 1
      %p45 = por %p43, %p44
      %p46 = scmp.ne.s32.totalorder %s38, %s41
      %p47 = scmp.eq.s32.totalorder %s14, 0
      %p48 = por %p46, %p47
      %p49 = scmp.ne.s32.totalorder %s38, %s41
      %p50 = scmp.eq.s32.totalorder %s19, 1
      %p51 = por %p49, %p50
      %p52 = scmp.ne.s32.totalorder %s41, %s42
      %p53 = scmp.eq.s32.totalorder %s19, 0
      %p54 = por %p52, %p53
      %p55 = scmp.ne.s32.totalorder %s41, %s42
      %p56 = scmp.eq.s32.totalorder %s20, 1
      %p57 = por %p55, %p56
      %p59 = scmp.ne.s32.totalorder %s42, %s58
      %p60 = scmp.eq.s32.totalorder %s20, 0
      %p61 = por %p59, %p60
      %s62 = ssub.s32 %s21, %s33
      %p63 = scmp.eq.s32.totalorder %s62, 0
      %s65 = sadd.s32 %s64, 1
      %s66 = scalar_select %p63, %s64, %s65
      %p69 = pneg %p63
      %p70 = scmp.eq.s32.totalorder %s14, 1
      %p71 = por %p69, %p70
      %p72 = scmp.ne.s32.totalorder %s64, %s67
      %p73 = scmp.eq.s32.totalorder %s14, 0
      %p74 = por %p72, %p73
      %p75 = scmp.ne.s32.totalorder %s64, %s67
      %p76 = scmp.eq.s32.totalorder %s19, 1
      %p77 = por %p75, %p76
      %p78 = scmp.ne.s32.totalorder %s67, %s68
      %p79 = scmp.eq.s32.totalorder %s19, 0
      %p80 = por %p78, %p79
      %p81 = scmp.ne.s32.totalorder %s67, %s68
      %p82 = scmp.eq.s32.totalorder %s20, 1
      %p83 = por %p81, %p82
      %p85 = scmp.ne.s32.totalorder %s68, %s84
      %p86 = scmp.eq.s32.totalorder %s20, 0
      %p87 = por %p85, %p86
      %s88 = ssub.s32 %s21, %s33
      %p89 = scmp.eq.s32.totalorder %s88, 0
      %s91 = sadd.s32 %s90, 1
      %s92 = scalar_select %p89, %s90, %s91
      %p95 = pneg %p89
      %p96 = scmp.eq.s32.totalorder %s14, 1
      %p97 = por %p95, %p96
      %p98 = scmp.ne.s32.totalorder %s90, %s93
      %p99 = scmp.eq.s32.totalorder %s14, 0
      %p100 = por %p98, %p99
      %p101 = scmp.ne.s32.totalorder %s90, %s93
      %p102 = scmp.eq.s32.totalorder %s19, 1
      %p103 = por %p101, %p102
      %p104 = scmp.ne.s32.totalorder %s93, %s94
      %p105 = scmp.eq.s32.totalorder %s19, 0
      %p106 = por %p104, %p105
      %p107 = scmp.ne.s32.totalorder %s93, %s94
      %p108 = scmp.eq.s32.totalorder %s20, 1
      %p109 = por %p107, %p108
      %p111 = scmp.ne.s32.totalorder %s94, %s110
      %p112 = scmp.eq.s32.totalorder %s20, 0
      %p113 = por %p111, %p112
      %s115 = sadd.s32 %s114, 1
      %p118 = scmp.eq.s32.totalorder %s14, 1
      %p119 = scmp.ne.s32.totalorder %s114, %s116
      %p120 = scmp.eq.s32.totalorder %s14, 0
      %p121 = por %p119, %p120
      %p122 = scmp.ne.s32.totalorder %s114, %s116
      %p123 = scmp.eq.s32.totalorder %s19, 1
      %p124 = por %p122, %p123
      %p125 = scmp.ne.s32.totalorder %s116, %s117
      %p126 = scmp.eq.s32.totalorder %s19, 0
      %p127 = por %p125, %p126
      %p128 = scmp.ne.s32.totalorder %s116, %s117
      %p129 = scmp.eq.s32.totalorder %s20, 1
      %p130 = por %p128, %p129
      %p132 = scmp.ne.s32.totalorder %s117, %s131
      %p133 = scmp.eq.s32.totalorder %s20, 0
      %p134 = por %p132, %p133
      %s136 = sadd.s32 %s135, 1
      %p139 = scmp.eq.s32.totalorder %s14, 1
      %p140 = scmp.ne.s32.totalorder %s135, %s137
      %p141 = scmp.eq.s32.totalorder %s14, 0
      %p142 = por %p140, %p141
      %p143 = scmp.ne.s32.totalorder %s135, %s137
      %p144 = scmp.eq.s32.totalorder %s19, 1
      %p145 = por %p143, %p144
      %p146 = scmp.ne.s32.totalorder %s137, %s138
      %p147 = scmp.eq.s32.totalorder %s19, 0
      %p148 = por %p146, %p147
      %p149 = scmp.ne.s32.totalorder %s137, %s138
      %p150 = scmp.eq.s32.totalorder %s20, 1
      %p151 = por %p149, %p150
      %p153 = scmp.ne.s32.totalorder %s138, %s152
      %p154 = scmp.eq.s32.totalorder %s20, 0
      %p155 = por %p153, %p154
      %s156 = ssub.s32 %s21, %s33
      %s157 = ssub.s32 %s22, %s29
      %s158 = sor.u32 %s156, %s157
      %p159 = scmp.eq.s32.totalorder %s158, 0
      %s161 = sadd.s32 %s160, 1
      %s162 = scalar_select %p159, %s160, %s161
      %p165 = pneg %p159
      %p166 = scmp.eq.s32.totalorder %s14, 1
      %p167 = por %p165, %p166
      %p168 = scmp.ne.s32.totalorder %s160, %s163
      %p169 = scmp.eq.s32.totalorder %s14, 0
      %p170 = por %p168, %p169
      %p171 = scmp.ne.s32.totalorder %s160, %s163
      %p172 = scmp.eq.s32.totalorder %s19, 1
      %p173 = por %p171, %p172
      %p174 = scmp.ne.s32.totalorder %s163, %s164
      %p175 = scmp.eq.s32.totalorder %s19, 0
      %p176 = por %p174, %p175
      %p177 = scmp.ne.s32.totalorder %s163, %s164
      %p178 = scmp.eq.s32.totalorder %s20, 1
      %p179 = por %p177, %p178
      %p181 = scmp.ne.s32.totalorder %s164, %s180
      %p182 = scmp.eq.s32.totalorder %s20, 0
      %p183 = por %p181, %p182
      %p184 = scmp.le.s32.totalorder 1, %s14
      %p185 = scmp.lt.s32.totalorder %s14, 3
      %p186 = pnand %p184, %p185
      %p187 = pneg %p186
      // Predicated region
      $region9: #{tpu_custom_call.1} parent=5 // pred_check
        _
      $region10: #{tpu_custom_call.1} parent=5 // pred_check_branch
        %189 = sbr.rel (%p186) target = $region12
      $region11: #{tpu_custom_call.1} parent=5 // pred_region
        %s190 = ssub.s32 %s14, 1
        // Predicated region
        $region13: #{tpu_custom_call.1} parent=11 // pred_check
          %p191 = pneg %p127
        $region14: #{tpu_custom_call.1} parent=11 // pred_check_branch
          %193 = sbr.rel (%p191) target = $region16
        $region15: #{tpu_custom_call.1} parent=11 // pred_region
          _
        $region16: #{tpu_custom_call.1} parent=11 // pred_fallthru
          _
        // Predicated region
        $region17: #{tpu_custom_call.1} parent=11 // pred_check
          %p194 = pneg %p148
        $region18: #{tpu_custom_call.1} parent=11 // pred_check_branch
          %196 = sbr.rel (%p194) target = $region20
        $region19: #{tpu_custom_call.1} parent=11 // pred_region
          _
        $region20: #{tpu_custom_call.1} parent=11 // pred_fallthru
          _
      $region12: #{tpu_custom_call.1} parent=5 // pred_fallthru
        _
      %p197 = scmp.lt.s32.totalorder %s14, 2
      // Predicated region
      $region21: #{tpu_custom_call.1} parent=5 // pred_check
        %p198 = pneg %p197
      $region22: #{tpu_custom_call.1} parent=5 // pred_check_branch
        %200 = sbr.rel (%p198) target = $region24
      $region23: #{tpu_custom_call.1} parent=5 // pred_region
        // Predicated region
        $region25: #{tpu_custom_call.1} parent=23 // pred_check
          %p201 = pneg %p48
        $region26: #{tpu_custom_call.1} parent=23 // pred_check_branch
          %203 = sbr.rel (%p201) target = $region28
        $region27: #{tpu_custom_call.1} parent=23 // pred_region
          %s204 = smul.u32 2, %s22
          %p205 = scmp.lt.s32.totalorder %s21, 1
          %s206 = scalar_select %p205, %s21, 1
          %p207 = scmp.lt.s32.totalorder %s204, 1
          %s208 = scalar_select %p207, %s204, 1
          %s209 = smul.addr %s206, 32
          %s210 = sadd.s32 %s208, %s209
          %s211 = smul.addr %s210, 8
          %s212 = scalar_lea.vmem %s0, %s211
          %s213 = smul.u32 2, %s22
        $region28: #{tpu_custom_call.1} parent=23 // pred_fallthru
          _
        // Predicated region
        $region29: #{tpu_custom_call.1} parent=23 // pred_check
          %p214 = pneg %p74
        $region30: #{tpu_custom_call.1} parent=23 // pred_check_branch
          %216 = sbr.rel (%p214) target = $region32
        $region31: #{tpu_custom_call.1} parent=23 // pred_region
          %p217 = scmp.lt.s32.totalorder %s21, 1
          %s218 = scalar_select %p217, %s21, 1
          %s219 = smul.addr %s218, 16
          %s220 = smul.addr %s219, 8
          %s221 = scalar_lea.vmem %s1, %s220
        $region32: #{tpu_custom_call.1} parent=23 // pred_fallthru
          _
        // Predicated region
        $region33: #{tpu_custom_call.1} parent=23 // pred_check
          %p222 = pneg %p100
        $region34: #{tpu_custom_call.1} parent=23 // pred_check_branch
          %224 = sbr.rel (%p222) target = $region36
        $region35: #{tpu_custom_call.1} parent=23 // pred_region
          %p225 = scmp.lt.s32.totalorder %s21, 1
          %s226 = scalar_select %p225, %s21, 1
          %s227 = smul.addr %s226, 16
          %s228 = smul.addr %s227, 8
          %s229 = scalar_lea.vmem %s2, %s228
        $region36: #{tpu_custom_call.1} parent=23 // pred_fallthru
          _
      $region24: #{tpu_custom_call.1} parent=5 // pred_fallthru
        _
      %p230 = scmp.le.s32.totalorder 1, %s14
      %p231 = scmp.lt.s32.totalorder %s14, 3
      %p232 = pnand %p230, %p231
      %p233 = pneg %p232
      // Predicated region
      $region37: #{tpu_custom_call.1} parent=5 // pred_check
        _
      $region38: #{tpu_custom_call.1} parent=5 // pred_check_branch
        %235 = sbr.rel (%p232) target = $region40
      $region39: #{tpu_custom_call.1} parent=5 // pred_region
        %s236 = ssub.s32 %s14, 1
        %s237 = smul.u32 2, %s24
        %p238 = scmp.lt.s32.totalorder %s23, 1
        %s239 = scalar_select %p238, %s23, 1
        %p240 = scmp.lt.s32.totalorder %s237, 1
        %s241 = scalar_select %p240, %s237, 1
        %s242 = smul.addr %s239, 32
        %s243 = sadd.s32 %s241, %s242
        %s244 = smul.addr %s243, 8
        %s245 = scalar_lea.vmem %s0, %s244
        %p246 = pneg %p54
        %p247 = pneg %p51
        %p248 = scmp.lt.s32.totalorder %s23, 1
        %s249 = scalar_select %p248, %s23, 1
        %s250 = smul.addr %s249, 16
        %s251 = smul.addr %s250, 8
        %s252 = scalar_lea.vmem %s1, %s251
        %p253 = pneg %p80
        %p254 = pneg %p77
        %p255 = scmp.lt.s32.totalorder %s23, 1
        %s256 = scalar_select %p255, %s23, 1
        %s257 = smul.addr %s256, 16
        %s258 = smul.addr %s257, 8
        %s259 = scalar_lea.vmem %s2, %s258
        %p260 = pneg %p106
        %p261 = pneg %p103
        %p262 = pneg %p127
        %p263 = pneg %p124
        %p264 = pneg %p148
        %p265 = pneg %p145
        %p266 = pneg %p176
        %p267 = pneg %p173
        %s268 = sand.u32 %s163, 1
        %s269 = scalar_lea.sflag [#allocation3], %s268
        %s270 = sand.u32 %s163, 1
        %s271 = smul.addr %s270, 384
        %s272 = scalar_lea.vmem [#allocation2], %s271
        %s273 = smul.u32 2, %s24
        %p274 = scmp.lt.s32.totalorder %s23, 1
        %s275 = scalar_select %p274, %s23, 1
        %p276 = scmp.lt.s32.totalorder %s273, 1
        %s277 = scalar_select %p276, %s273, 1
        %s278 = smul.addr %s275, 32
        %s279 = sadd.s32 %s277, %s278
        %s280 = smul.addr %s279, 8
        %s281 = scalar_lea.vmem %s0, %s280
        %s282 = smul.u32 2, %s24
        %p283 = scmp.lt.s32.totalorder %s23, 1
        %s284 = scalar_select %p283, %s23, 1
        %s285 = smul.addr %s284, 16
        %s286 = smul.addr %s285, 8
        %s287 = scalar_lea.vmem %s1, %s286
        %p288 = scmp.lt.s32.totalorder %s23, 1
        %s289 = scalar_select %p288, %s23, 1
        %s290 = smul.addr %s289, 16
        %s291 = smul.addr %s290, 8
        %s292 = scalar_lea.vmem %s2, %s291
        %s293 = smul.u32 2, %s24
        %v294 = vld [vmem:[%s281] sm:$0xff]
        %v295 = vld [vmem:[%s281 + $0x8] sm:$0xff]
        %v296 = vld [vmem:[%s281 + $0x10] sm:$0xff]
        %v297 = vld [vmem:[%s281 + $0x18] sm:$0xff]
        %v298 = vld [vmem:[%s281 + $0x20] sm:$0xff]
        %v299 = vld [vmem:[%s281 + $0x28] sm:$0xff]
        %v300 = vld [vmem:[%s281 + $0x30] sm:$0xff]
        %v301 = vld [vmem:[%s281 + $0x38] sm:$0xff]
        %v302 = vld [vmem:[%s281 + $0x40] sm:$0xff]
        %v303 = vld [vmem:[%s281 + $0x48] sm:$0xff]
        %v304 = vld [vmem:[%s281 + $0x50] sm:$0xff]
        %v305 = vld [vmem:[%s281 + $0x58] sm:$0xff]
        %v306 = vld [vmem:[%s281 + $0x60] sm:$0xff]
        %v307 = vld [vmem:[%s281 + $0x68] sm:$0xff]
        %v308 = vld [vmem:[%s281 + $0x70] sm:$0xff]
        %v309 = vld [vmem:[%s281 + $0x78] sm:$0xff]
        %v310 = vld [vmem:[%s281 + $0x80] sm:$0xff]
        %v311 = vld [vmem:[%s281 + $0x88] sm:$0xff]
        %v312 = vld [vmem:[%s281 + $0x90] sm:$0xff]
        %v313 = vld [vmem:[%s281 + $0x98] sm:$0xff]
        %v314 = vld [vmem:[%s281 + $0xa0] sm:$0xff]
        %v315 = vld [vmem:[%s281 + $0xa8] sm:$0xff]
        %v316 = vld [vmem:[%s281 + $0xb0] sm:$0xff]
        %v317 = vld [vmem:[%s281 + $0xb8] sm:$0xff]
        %v318 = vld [vmem:[%s281 + $0xc0] sm:$0xff]
        %v319 = vld [vmem:[%s281 + $0xc8] sm:$0xff]
        %v320 = vld [vmem:[%s281 + $0xd0] sm:$0xff]
        %v321 = vld [vmem:[%s281 + $0xd8] sm:$0xff]
        %v322 = vld [vmem:[%s281 + $0xe0] sm:$0xff]
        %v323 = vld [vmem:[%s281 + $0xe8] sm:$0xff]
        %v324 = vld [vmem:[%s281 + $0xf0] sm:$0xff]
        %v325 = vld [vmem:[%s281 + $0xf8] sm:$0xff]
        %v326 = vld [vmem:[%s287] sm:$0xff]
        %v327 = vld [vmem:[%s287 + $0x8] sm:$0xff]
        %v328 = vld [vmem:[%s287 + $0x10] sm:$0xff]
        %v329 = vld [vmem:[%s287 + $0x18] sm:$0xff]
        %v330 = vld [vmem:[%s287 + $0x20] sm:$0xff]
        %v331 = vld [vmem:[%s287 + $0x28] sm:$0xff]
        %v332 = vld [vmem:[%s287 + $0x30] sm:$0xff]
        %v333 = vld [vmem:[%s287 + $0x38] sm:$0xff]
        %v334 = vld [vmem:[%s287 + $0x40] sm:$0xff]
        %v335 = vld [vmem:[%s287 + $0x48] sm:$0xff]
        %v336 = vld [vmem:[%s287 + $0x50] sm:$0xff]
        %v337 = vld [vmem:[%s287 + $0x58] sm:$0xff]
        %v338 = vld [vmem:[%s287 + $0x60] sm:$0xff]
        %v339 = vld [vmem:[%s287 + $0x68] sm:$0xff]
        %v340 = vld [vmem:[%s287 + $0x70] sm:$0xff]
        %v341 = vld [vmem:[%s287 + $0x78] sm:$0xff]
        %343 = vset.pattern.permute.xlu0 0
        %344 = vperm.xlu0 %343, %v326
        %v345 = vpop.permute.xlu0 %344
        %348 = vset.pattern.permute.xlu0 0
        %349 = vperm.xlu0 %348, %v327
        %v350 = vpop.permute.xlu0 %349
        %353 = vset.pattern.permute.xlu0 0
        %354 = vperm.xlu0 %353, %v328
        %v355 = vpop.permute.xlu0 %354
        %358 = vset.pattern.permute.xlu0 0
        %359 = vperm.xlu0 %358, %v329
        %v360 = vpop.permute.xlu0 %359
        %363 = vset.pattern.permute.xlu0 0
        %364 = vperm.xlu0 %363, %v330
        %v365 = vpop.permute.xlu0 %364
        %368 = vset.pattern.permute.xlu0 0
        %369 = vperm.xlu0 %368, %v331
        %v370 = vpop.permute.xlu0 %369
        %373 = vset.pattern.permute.xlu0 0
        %374 = vperm.xlu0 %373, %v332
        %v375 = vpop.permute.xlu0 %374
        %378 = vset.pattern.permute.xlu0 0
        %379 = vperm.xlu0 %378, %v333
        %v380 = vpop.permute.xlu0 %379
        %383 = vset.pattern.permute.xlu0 0
        %384 = vperm.xlu0 %383, %v334
        %v385 = vpop.permute.xlu0 %384
        %388 = vset.pattern.permute.xlu0 0
        %389 = vperm.xlu0 %388, %v335
        %v390 = vpop.permute.xlu0 %389
        %393 = vset.pattern.permute.xlu0 0
        %394 = vperm.xlu0 %393, %v336
        %v395 = vpop.permute.xlu0 %394
        %398 = vset.pattern.permute.xlu0 0
        %399 = vperm.xlu0 %398, %v337
        %v400 = vpop.permute.xlu0 %399
        %403 = vset.pattern.permute.xlu0 0
        %404 = vperm.xlu0 %403, %v338
        %v405 = vpop.permute.xlu0 %404
        %408 = vset.pattern.permute.xlu0 0
        %409 = vperm.xlu0 %408, %v339
        %v410 = vpop.permute.xlu0 %409
        %413 = vset.pattern.permute.xlu0 0
        %414 = vperm.xlu0 %413, %v340
        %v415 = vpop.permute.xlu0 %414
        %418 = vset.pattern.permute.xlu0 0
        %419 = vperm.xlu0 %418, %v341
        %v420 = vpop.permute.xlu0 %419
        %v422 = vmul.f32 %v294, %v345
        %v423 = vmul.f32 %v295, %v345
        %v424 = vmul.f32 %v296, %v350
        %v425 = vmul.f32 %v297, %v350
        %v426 = vmul.f32 %v298, %v355
        %v427 = vmul.f32 %v299, %v355
        %v428 = vmul.f32 %v300, %v360
        %v429 = vmul.f32 %v301, %v360
        %v430 = vmul.f32 %v302, %v365
        %v431 = vmul.f32 %v303, %v365
        %v432 = vmul.f32 %v304, %v370
        %v433 = vmul.f32 %v305, %v370
        %v434 = vmul.f32 %v306, %v375
        %v435 = vmul.f32 %v307, %v375
        %v436 = vmul.f32 %v308, %v380
        %v437 = vmul.f32 %v309, %v380
        %v438 = vmul.f32 %v310, %v385
        %v439 = vmul.f32 %v311, %v385
        %v440 = vmul.f32 %v312, %v390
        %v441 = vmul.f32 %v313, %v390
        %v442 = vmul.f32 %v314, %v395
        %v443 = vmul.f32 %v315, %v395
        %v444 = vmul.f32 %v316, %v400
        %v445 = vmul.f32 %v317, %v400
        %v446 = vmul.f32 %v318, %v405
        %v447 = vmul.f32 %v319, %v405
        %v448 = vmul.f32 %v320, %v410
        %v449 = vmul.f32 %v321, %v410
        %v450 = vmul.f32 %v322, %v415
        %v451 = vmul.f32 %v323, %v415
        %v452 = vmul.f32 %v324, %v420
        %v453 = vmul.f32 %v325, %v420
        %v454 = vld [vmem:[%s292] sm:$0xff]
        %v455 = vld [vmem:[%s292 + $0x8] sm:$0xff]
        %v456 = vld [vmem:[%s292 + $0x10] sm:$0xff]
        %v457 = vld [vmem:[%s292 + $0x18] sm:$0xff]
        %v458 = vld [vmem:[%s292 + $0x20] sm:$0xff]
        %v459 = vld [vmem:[%s292 + $0x28] sm:$0xff]
        %v460 = vld [vmem:[%s292 + $0x30] sm:$0xff]
        %v461 = vld [vmem:[%s292 + $0x38] sm:$0xff]
        %v462 = vld [vmem:[%s292 + $0x40] sm:$0xff]
        %v463 = vld [vmem:[%s292 + $0x48] sm:$0xff]
        %v464 = vld [vmem:[%s292 + $0x50] sm:$0xff]
        %v465 = vld [vmem:[%s292 + $0x58] sm:$0xff]
        %v466 = vld [vmem:[%s292 + $0x60] sm:$0xff]
        %v467 = vld [vmem:[%s292 + $0x68] sm:$0xff]
        %v468 = vld [vmem:[%s292 + $0x70] sm:$0xff]
        %v469 = vld [vmem:[%s292 + $0x78] sm:$0xff]
        %471 = vset.pattern.permute.xlu0 0
        %472 = vperm.xlu0 %471, %v454
        %v473 = vpop.permute.xlu0 %472
        %476 = vset.pattern.permute.xlu0 0
        %477 = vperm.xlu0 %476, %v455
        %v478 = vpop.permute.xlu0 %477
        %481 = vset.pattern.permute.xlu0 0
        %482 = vperm.xlu0 %481, %v456
        %v483 = vpop.permute.xlu0 %482
        %486 = vset.pattern.permute.xlu0 0
        %487 = vperm.xlu0 %486, %v457
        %v488 = vpop.permute.xlu0 %487
        %491 = vset.pattern.permute.xlu0 0
        %492 = vperm.xlu0 %491, %v458
        %v493 = vpop.permute.xlu0 %492
        %496 = vset.pattern.permute.xlu0 0
        %497 = vperm.xlu0 %496, %v459
        %v498 = vpop.permute.xlu0 %497
        %501 = vset.pattern.permute.xlu0 0
        %502 = vperm.xlu0 %501, %v460
        %v503 = vpop.permute.xlu0 %502
        %506 = vset.pattern.permute.xlu0 0
        %507 = vperm.xlu0 %506, %v461
        %v508 = vpop.permute.xlu0 %507
        %511 = vset.pattern.permute.xlu0 0
        %512 = vperm.xlu0 %511, %v462
        %v513 = vpop.permute.xlu0 %512
        %516 = vset.pattern.permute.xlu0 0
        %517 = vperm.xlu0 %516, %v463
        %v518 = vpop.permute.xlu0 %517
        %521 = vset.pattern.permute.xlu0 0
        %522 = vperm.xlu0 %521, %v464
        %v523 = vpop.permute.xlu0 %522
        %526 = vset.pattern.permute.xlu0 0
        %527 = vperm.xlu0 %526, %v465
        %v528 = vpop.permute.xlu0 %527
        %531 = vset.pattern.permute.xlu0 0
        %532 = vperm.xlu0 %531, %v466
        %v533 = vpop.permute.xlu0 %532
        %536 = vset.pattern.permute.xlu0 0
        %537 = vperm.xlu0 %536, %v467
        %v538 = vpop.permute.xlu0 %537
        %541 = vset.pattern.permute.xlu0 0
        %542 = vperm.xlu0 %541, %v468
        %v543 = vpop.permute.xlu0 %542
        %546 = vset.pattern.permute.xlu0 0
        %547 = vperm.xlu0 %546, %v469
        %v548 = vpop.permute.xlu0 %547
        %v550 = vadd.f32 %v422, %v473
        %v551 = vadd.f32 %v423, %v473
        %v552 = vadd.f32 %v424, %v478
        %v553 = vadd.f32 %v425, %v478
        %v554 = vadd.f32 %v426, %v483
        %v555 = vadd.f32 %v427, %v483
        %v556 = vadd.f32 %v428, %v488
        %v557 = vadd.f32 %v429, %v488
        %v558 = vadd.f32 %v430, %v493
        %v559 = vadd.f32 %v431, %v493
        %v560 = vadd.f32 %v432, %v498
        %v561 = vadd.f32 %v433, %v498
        %v562 = vadd.f32 %v434, %v503
        %v563 = vadd.f32 %v435, %v503
        %v564 = vadd.f32 %v436, %v508
        %v565 = vadd.f32 %v437, %v508
        %v566 = vadd.f32 %v438, %v513
        %v567 = vadd.f32 %v439, %v513
        %v568 = vadd.f32 %v440, %v518
        %v569 = vadd.f32 %v441, %v518
        %v570 = vadd.f32 %v442, %v523
        %v571 = vadd.f32 %v443, %v523
        %v572 = vadd.f32 %v444, %v528
        %v573 = vadd.f32 %v445, %v528
        %v574 = vadd.f32 %v446, %v533
        %v575 = vadd.f32 %v447, %v533
        %v576 = vadd.f32 %v448, %v538
        %v577 = vadd.f32 %v449, %v538
        %v578 = vadd.f32 %v450, %v543
        %v579 = vadd.f32 %v451, %v543
        %v580 = vadd.f32 %v452, %v548
        %v581 = vadd.f32 %v453, %v548
        %v582 = vpack.c.bf16 %v552, %v550
        %v583 = vpack.c.bf16 %v553, %v551
        %v584 = vpack.c.bf16 %v556, %v554
        %v585 = vpack.c.bf16 %v557, %v555
        %v586 = vpack.c.bf16 %v560, %v558
        %v587 = vpack.c.bf16 %v561, %v559
        %v588 = vpack.c.bf16 %v564, %v562
        %v589 = vpack.c.bf16 %v565, %v563
        %v590 = vpack.c.bf16 %v568, %v566
        %v591 = vpack.c.bf16 %v569, %v567
        %v592 = vpack.c.bf16 %v572, %v570
        %v593 = vpack.c.bf16 %v573, %v571
        %v594 = vpack.c.bf16 %v576, %v574
        %v595 = vpack.c.bf16 %v577, %v575
        %v596 = vpack.c.bf16 %v580, %v578
        %v597 = vpack.c.bf16 %v581, %v579
        %v598 = vld [vmem:[%s3] sm:$0xf]
        %v599 = vld [vmem:[%s3 + $0x4] sm:$0xf]
        %v600 = vld [vmem:[%s3 + $0x8] sm:$0xf]
        %v601 = vld [vmem:[%s3 + $0xc] sm:$0xf]
        %v602 = vld [vmem:[%s3 + $0x10] sm:$0xf]
        %v603 = vld [vmem:[%s3 + $0x14] sm:$0xf]
        %v604 = vld [vmem:[%s3 + $0x18] sm:$0xf]
        %v605 = vld [vmem:[%s3 + $0x1c] sm:$0xf]
        %v606 = vld [vmem:[%s3 + $0x20] sm:$0xf]
        %v607 = vld [vmem:[%s3 + $0x24] sm:$0xf]
        %v608 = vld [vmem:[%s3 + $0x28] sm:$0xf]
        %v609 = vld [vmem:[%s3 + $0x2c] sm:$0xf]
        %v610 = vld [vmem:[%s3 + $0x30] sm:$0xf]
        %v611 = vld [vmem:[%s3 + $0x34] sm:$0xf]
        %v612 = vld [vmem:[%s3 + $0x38] sm:$0xf]
        %v613 = vld [vmem:[%s3 + $0x3c] sm:$0xf]
        %v614 = vld [vmem:[%s3 + $0x40] sm:$0xf]
        %v615 = vld [vmem:[%s3 + $0x44] sm:$0xf]
        %v616 = vld [vmem:[%s3 + $0x48] sm:$0xf]
        %v617 = vld [vmem:[%s3 + $0x4c] sm:$0xf]
        %v618 = vld [vmem:[%s3 + $0x50] sm:$0xf]
        %v619 = vld [vmem:[%s3 + $0x54] sm:$0xf]
        %v620 = vld [vmem:[%s3 + $0x58] sm:$0xf]
        %v621 = vld [vmem:[%s3 + $0x5c] sm:$0xf]
        %v622 = vld [vmem:[%s3 + $0x60] sm:$0xf]
        %v623 = vld [vmem:[%s3 + $0x64] sm:$0xf]
        %v624 = vld [vmem:[%s3 + $0x68] sm:$0xf]
        %v625 = vld [vmem:[%s3 + $0x6c] sm:$0xf]
        %v626 = vld [vmem:[%s3 + $0x70] sm:$0xf]
        %v627 = vld [vmem:[%s3 + $0x74] sm:$0xf]
        %v628 = vld [vmem:[%s3 + $0x78] sm:$0xf]
        %v629 = vld [vmem:[%s3 + $0x7c] sm:$0xf]
        %v630 = vld [vmem:[%s3 + $0x80] sm:$0xf]
        %v631 = vld [vmem:[%s3 + $0x84] sm:$0xf]
        %v632 = vld [vmem:[%s3 + $0x88] sm:$0xf]
        %v633 = vld [vmem:[%s3 + $0x8c] sm:$0xf]
        %v634 = vld [vmem:[%s3 + $0x90] sm:$0xf]
        %v635 = vld [vmem:[%s3 + $0x94] sm:$0xf]
        %v636 = vld [vmem:[%s3 + $0x98] sm:$0xf]
        %v637 = vld [vmem:[%s3 + $0x9c] sm:$0xf]
        %v638 = vld [vmem:[%s3 + $0xa0] sm:$0xf]
        %v639 = vld [vmem:[%s3 + $0xa4] sm:$0xf]
        %v640 = vld [vmem:[%s3 + $0xa8] sm:$0xf]
        %v641 = vld [vmem:[%s3 + $0xac] sm:$0xf]
        %v642 = vld [vmem:[%s3 + $0xb0] sm:$0xf]
        %v643 = vld [vmem:[%s3 + $0xb4] sm:$0xf]
        %v644 = vld [vmem:[%s3 + $0xb8] sm:$0xf]
        %v645 = vld [vmem:[%s3 + $0xbc] sm:$0xf]
        %v646 = vld [vmem:[%s4] sm:$0xff]
        %v647 = vld [vmem:[%s4 + $0x8] sm:$0xff]
        %v648 = vld [vmem:[%s4 + $0x10] sm:$0xff]
        %v649 = vld [vmem:[%s4 + $0x18] sm:$0xff]
        %v650 = vld [vmem:[%s4 + $0x20] sm:$0xff]
        %v651 = vld [vmem:[%s4 + $0x28] sm:$0xff]
        %v652 = vld [vmem:[%s4 + $0x30] sm:$0xff]
        %v653 = vld [vmem:[%s4 + $0x38] sm:$0xff]
        %v654 = vld [vmem:[%s4 + $0x40] sm:$0xff]
        %v655 = vld [vmem:[%s4 + $0x48] sm:$0xff]
        %v656 = vld [vmem:[%s4 + $0x50] sm:$0xff]
        %v657 = vld [vmem:[%s4 + $0x58] sm:$0xff]
        %v658 = vld [vmem:[%s4 + $0x60] sm:$0xff]
        %v659 = vld [vmem:[%s4 + $0x68] sm:$0xff]
        %v660 = vld [vmem:[%s4 + $0x70] sm:$0xff]
        %v661 = vld [vmem:[%s4 + $0x78] sm:$0xff]
        %v662 = vld [vmem:[%s4 + $0x80] sm:$0xff]
        %v663 = vld [vmem:[%s4 + $0x88] sm:$0xff]
        %v664 = vld [vmem:[%s4 + $0x90] sm:$0xff]
        %v665 = vld [vmem:[%s4 + $0x98] sm:$0xff]
        %v666 = vld [vmem:[%s4 + $0xa0] sm:$0xff]
        %v667 = vld [vmem:[%s4 + $0xa8] sm:$0xff]
        %v668 = vld [vmem:[%s4 + $0xb0] sm:$0xff]
        %v669 = vld [vmem:[%s4 + $0xb8] sm:$0xff]
        %v670 = vld [vmem:[%s4 + $0xc0] sm:$0xff]
        %v671 = vld [vmem:[%s4 + $0xc8] sm:$0xff]
        %v672 = vld [vmem:[%s4 + $0xd0] sm:$0xff]
        %v673 = vld [vmem:[%s4 + $0xd8] sm:$0xff]
        %v674 = vld [vmem:[%s4 + $0xe0] sm:$0xff]
        %v675 = vld [vmem:[%s4 + $0xe8] sm:$0xff]
        %v676 = vld [vmem:[%s4 + $0xf0] sm:$0xff]
        %v677 = vld [vmem:[%s4 + $0xf8] sm:$0xff]
        %v678 = vld [vmem:[%s4 + $0x100] sm:$0xff]
        %v679 = vld [vmem:[%s4 + $0x108] sm:$0xff]
        %v680 = vld [vmem:[%s4 + $0x110] sm:$0xff]
        %v681 = vld [vmem:[%s4 + $0x118] sm:$0xff]
        %v682 = vld [vmem:[%s4 + $0x120] sm:$0xff]
        %v683 = vld [vmem:[%s4 + $0x128] sm:$0xff]
        %v684 = vld [vmem:[%s4 + $0x130] sm:$0xff]
        %v685 = vld [vmem:[%s4 + $0x138] sm:$0xff]
        %v686 = vld [vmem:[%s4 + $0x140] sm:$0xff]
        %v687 = vld [vmem:[%s4 + $0x148] sm:$0xff]
        %v688 = vld [vmem:[%s4 + $0x150] sm:$0xff]
        %v689 = vld [vmem:[%s4 + $0x158] sm:$0xff]
        %v690 = vld [vmem:[%s4 + $0x160] sm:$0xff]
        %v691 = vld [vmem:[%s4 + $0x168] sm:$0xff]
        %v692 = vld [vmem:[%s4 + $0x170] sm:$0xff]
        %v693 = vld [vmem:[%s4 + $0x178] sm:$0xff]
        %695 = vset.pattern.permute.xlu0 0
        %696 = vperm.xlu0 %695, %v646
        %v697 = vpop.permute.xlu0 %696
        %700 = vset.pattern.permute.xlu0 0
        %701 = vperm.xlu0 %700, %v647
        %v702 = vpop.permute.xlu0 %701
        %705 = vset.pattern.permute.xlu0 0
        %706 = vperm.xlu0 %705, %v648
        %v707 = vpop.permute.xlu0 %706
        %710 = vset.pattern.permute.xlu0 0
        %711 = vperm.xlu0 %710, %v649
        %v712 = vpop.permute.xlu0 %711
        %715 = vset.pattern.permute.xlu0 0
        %716 = vperm.xlu0 %715, %v650
        %v717 = vpop.permute.xlu0 %716
        %720 = vset.pattern.permute.xlu0 0
        %721 = vperm.xlu0 %720, %v651
        %v722 = vpop.permute.xlu0 %721
        %725 = vset.pattern.permute.xlu0 0
        %726 = vperm.xlu0 %725, %v652
        %v727 = vpop.permute.xlu0 %726
        %730 = vset.pattern.permute.xlu0 0
        %731 = vperm.xlu0 %730, %v653
        %v732 = vpop.permute.xlu0 %731
        %735 = vset.pattern.permute.xlu0 0
        %736 = vperm.xlu0 %735, %v654
        %v737 = vpop.permute.xlu0 %736
        %740 = vset.pattern.permute.xlu0 0
        %741 = vperm.xlu0 %740, %v655
        %v742 = vpop.permute.xlu0 %741
        %745 = vset.pattern.permute.xlu0 0
        %746 = vperm.xlu0 %745, %v656
        %v747 = vpop.permute.xlu0 %746
        %750 = vset.pattern.permute.xlu0 0
        %751 = vperm.xlu0 %750, %v657
        %v752 = vpop.permute.xlu0 %751
        %755 = vset.pattern.permute.xlu0 0
        %756 = vperm.xlu0 %755, %v658
        %v757 = vpop.permute.xlu0 %756
        %760 = vset.pattern.permute.xlu0 0
        %761 = vperm.xlu0 %760, %v659
        %v762 = vpop.permute.xlu0 %761
        %765 = vset.pattern.permute.xlu0 0
        %766 = vperm.xlu0 %765, %v660
        %v767 = vpop.permute.xlu0 %766
        %770 = vset.pattern.permute.xlu0 0
        %771 = vperm.xlu0 %770, %v661
        %v772 = vpop.permute.xlu0 %771
        %775 = vset.pattern.permute.xlu0 0
        %776 = vperm.xlu0 %775, %v662
        %v777 = vpop.permute.xlu0 %776
        %780 = vset.pattern.permute.xlu0 0
        %781 = vperm.xlu0 %780, %v663
        %v782 = vpop.permute.xlu0 %781
        %785 = vset.pattern.permute.xlu0 0
        %786 = vperm.xlu0 %785, %v664
        %v787 = vpop.permute.xlu0 %786
        %790 = vset.pattern.permute.xlu0 0
        %791 = vperm.xlu0 %790, %v665
        %v792 = vpop.permute.xlu0 %791
        %795 = vset.pattern.permute.xlu0 0
        %796 = vperm.xlu0 %795, %v666
        %v797 = vpop.permute.xlu0 %796
        %800 = vset.pattern.permute.xlu0 0
        %801 = vperm.xlu0 %800, %v667
        %v802 = vpop.permute.xlu0 %801
        %805 = vset.pattern.permute.xlu0 0
        %806 = vperm.xlu0 %805, %v668
        %v807 = vpop.permute.xlu0 %806
        %810 = vset.pattern.permute.xlu0 0
        %811 = vperm.xlu0 %810, %v669
        %v812 = vpop.permute.xlu0 %811
        %815 = vset.pattern.permute.xlu0 0
        %816 = vperm.xlu0 %815, %v670
        %v817 = vpop.permute.xlu0 %816
        %820 = vset.pattern.permute.xlu0 0
        %821 = vperm.xlu0 %820, %v671
        %v822 = vpop.permute.xlu0 %821
        %825 = vset.pattern.permute.xlu0 0
        %826 = vperm.xlu0 %825, %v672
        %v827 = vpop.permute.xlu0 %826
        %830 = vset.pattern.permute.xlu0 0
        %831 = vperm.xlu0 %830, %v673
        %v832 = vpop.permute.xlu0 %831
        %835 = vset.pattern.permute.xlu0 0
        %836 = vperm.xlu0 %835, %v674
        %v837 = vpop.permute.xlu0 %836
        %840 = vset.pattern.permute.xlu0 0
        %841 = vperm.xlu0 %840, %v675
        %v842 = vpop.permute.xlu0 %841
        %845 = vset.pattern.permute.xlu0 0
        %846 = vperm.xlu0 %845, %v676
        %v847 = vpop.permute.xlu0 %846
        %850 = vset.pattern.permute.xlu0 0
        %851 = vperm.xlu0 %850, %v677
        %v852 = vpop.permute.xlu0 %851
        %855 = vset.pattern.permute.xlu0 0
        %856 = vperm.xlu0 %855, %v678
        %v857 = vpop.permute.xlu0 %856
        %860 = vset.pattern.permute.xlu0 0
        %861 = vperm.xlu0 %860, %v679
        %v862 = vpop.permute.xlu0 %861
        %865 = vset.pattern.permute.xlu0 0
        %866 = vperm.xlu0 %865, %v680
        %v867 = vpop.permute.xlu0 %866
        %870 = vset.pattern.permute.xlu0 0
        %871 = vperm.xlu0 %870, %v681
        %v872 = vpop.permute.xlu0 %871
        %875 = vset.pattern.permute.xlu0 0
        %876 = vperm.xlu0 %875, %v682
        %v877 = vpop.permute.xlu0 %876
        %880 = vset.pattern.permute.xlu0 0
        %881 = vperm.xlu0 %880, %v683
        %v882 = vpop.permute.xlu0 %881
        %885 = vset.pattern.permute.xlu0 0
        %886 = vperm.xlu0 %885, %v684
        %v887 = vpop.permute.xlu0 %886
        %890 = vset.pattern.permute.xlu0 0
        %891 = vperm.xlu0 %890, %v685
        %v892 = vpop.permute.xlu0 %891
        %895 = vset.pattern.permute.xlu0 0
        %896 = vperm.xlu0 %895, %v686
        %v897 = vpop.permute.xlu0 %896
        %900 = vset.pattern.permute.xlu0 0
        %901 = vperm.xlu0 %900, %v687
        %v902 = vpop.permute.xlu0 %901
        %905 = vset.pattern.permute.xlu0 0
        %906 = vperm.xlu0 %905, %v688
        %v907 = vpop.permute.xlu0 %906
        %910 = vset.pattern.permute.xlu0 0
        %911 = vperm.xlu0 %910, %v689
        %v912 = vpop.permute.xlu0 %911
        %915 = vset.pattern.permute.xlu0 0
        %916 = vperm.xlu0 %915, %v690
        %v917 = vpop.permute.xlu0 %916
        %920 = vset.pattern.permute.xlu0 0
        %921 = vperm.xlu0 %920, %v691
        %v922 = vpop.permute.xlu0 %921
        %925 = vset.pattern.permute.xlu0 0
        %926 = vperm.xlu0 %925, %v692
        %v927 = vpop.permute.xlu0 %926
        %930 = vset.pattern.permute.xlu0 0
        %931 = vperm.xlu0 %930, %v693
        %v932 = vpop.permute.xlu0 %931
        %v982 = vunpack.c.l.b16 %v598
        %v983 = vunpack.c.l.b16 %v599
        %v984 = vunpack.c.l.b16 %v600
        %v985 = vunpack.c.l.b16 %v601
        %v986 = vunpack.c.l.b16 %v602
        %v987 = vunpack.c.l.b16 %v603
        %v988 = vunpack.c.l.b16 %v604
        %v989 = vunpack.c.l.b16 %v605
        %v990 = vunpack.c.l.b16 %v606
        %v991 = vunpack.c.l.b16 %v607
        %v992 = vunpack.c.l.b16 %v608
        %v993 = vunpack.c.l.b16 %v609
        %v994 = vunpack.c.l.b16 %v610
        %v995 = vunpack.c.l.b16 %v611
        %v996 = vunpack.c.l.b16 %v612
        %v997 = vunpack.c.l.b16 %v613
        %v998 = vunpack.c.l.b16 %v614
        %v999 = vunpack.c.l.b16 %v615
        %v1000 = vunpack.c.l.b16 %v616
        %v1001 = vunpack.c.l.b16 %v617
        %v1002 = vunpack.c.l.b16 %v618
        %v1003 = vunpack.c.l.b16 %v619
        %v1004 = vunpack.c.l.b16 %v620
        %v1005 = vunpack.c.l.b16 %v621
        %v1006 = vunpack.c.l.b16 %v622
        %v1007 = vunpack.c.l.b16 %v623
        %v1008 = vunpack.c.l.b16 %v624
        %v1009 = vunpack.c.l.b16 %v625
        %v1010 = vunpack.c.l.b16 %v626
        %v1011 = vunpack.c.l.b16 %v627
        %v1012 = vunpack.c.l.b16 %v628
        %v1013 = vunpack.c.l.b16 %v629
        %v1014 = vunpack.c.l.b16 %v630
        %v1015 = vunpack.c.l.b16 %v631
        %v1016 = vunpack.c.l.b16 %v632
        %v1017 = vunpack.c.l.b16 %v633
        %v1018 = vunpack.c.l.b16 %v634
        %v1019 = vunpack.c.l.b16 %v635
        %v1020 = vunpack.c.l.b16 %v636
        %v1021 = vunpack.c.l.b16 %v637
        %v1022 = vunpack.c.l.b16 %v638
        %v1023 = vunpack.c.l.b16 %v639
        %v1024 = vunpack.c.l.b16 %v640
        %v1025 = vunpack.c.l.b16 %v641
        %v1026 = vunpack.c.l.b16 %v642
        %v1027 = vunpack.c.l.b16 %v643
        %v1028 = vunpack.c.l.b16 %v644
        %v1029 = vunpack.c.l.b16 %v645
        %v1030 = vpack.c.b16 %v983, %v982
        %v1031 = vpack.c.b16 %v985, %v984
        %v1032 = vpack.c.b16 %v987, %v986
        %v1033 = vpack.c.b16 %v989, %v988
        %v1034 = vpack.c.b16 %v991, %v990
        %v1035 = vpack.c.b16 %v993, %v992
        %v1036 = vpack.c.b16 %v995, %v994
        %v1037 = vpack.c.b16 %v997, %v996
        %v1038 = vpack.c.b16 %v999, %v998
        %v1039 = vpack.c.b16 %v1001, %v1000
        %v1040 = vpack.c.b16 %v1003, %v1002
        %v1041 = vpack.c.b16 %v1005, %v1004
        %v1042 = vpack.c.b16 %v1007, %v1006
        %v1043 = vpack.c.b16 %v1009, %v1008
        %v1044 = vpack.c.b16 %v1011, %v1010
        %v1045 = vpack.c.b16 %v1013, %v1012
        %v1046 = vpack.c.b16 %v1015, %v1014
        %v1047 = vpack.c.b16 %v1017, %v1016
        %v1048 = vpack.c.b16 %v1019, %v1018
        %v1049 = vpack.c.b16 %v1021, %v1020
        %v1050 = vpack.c.b16 %v1023, %v1022
        %v1051 = vpack.c.b16 %v1025, %v1024
        %v1052 = vpack.c.b16 %v1027, %v1026
        %v1053 = vpack.c.b16 %v1029, %v1028
        %1078 = vmatpush.bf16.msra.mxu0 %v596
        %1079 = vmatpush.bf16.msra.mxu0 %v594
        %1080 = vmatpush.bf16.msra.mxu0 %v592
        %1081 = vmatpush.bf16.msra.mxu0 %v590
        %1082 = vmatpush.bf16.msra.mxu0 %v588
        %1083 = vmatpush.bf16.msra.mxu0 %v586
        %1084 = vmatpush.bf16.msra.mxu0 %v584
        %1085 = vmatpush.bf16.msra.mxu0 %v582
        %1086 = vmatmul.bf16.gmra.mxu0 %v1030
        %v1087 = vpop.f32.mrf.mxu0
        %v1088 = vadd.f32 %v697, %v1087
        %v1089 = vpop.f32.mrf.mxu0
        %v1090 = vadd.f32 %v702, %v1089
        %1091 = vmatmul.bf16.gmra.mxu0 %v1031
        %v1092 = vpop.f32.mrf.mxu0
        %v1093 = vadd.f32 %v707, %v1092
        %v1094 = vpop.f32.mrf.mxu0
        %v1095 = vadd.f32 %v712, %v1094
        %1096 = vmatmul.bf16.gmra.mxu0 %v1032
        %v1097 = vpop.f32.mrf.mxu0
        %v1098 = vadd.f32 %v717, %v1097
        %v1099 = vpop.f32.mrf.mxu0
        %v1100 = vadd.f32 %v722, %v1099
        %1101 = vmatmul.bf16.gmra.mxu0 %v1033
        %v1102 = vpop.f32.mrf.mxu0
        %v1103 = vadd.f32 %v727, %v1102
        %v1104 = vpop.f32.mrf.mxu0
        %v1105 = vadd.f32 %v732, %v1104
        %1106 = vmatmul.bf16.gmra.mxu0 %v1034
        %v1107 = vpop.f32.mrf.mxu0
        %v1108 = vadd.f32 %v737, %v1107
        %v1109 = vpop.f32.mrf.mxu0
        %v1110 = vadd.f32 %v742, %v1109
        %1111 = vmatmul.bf16.gmra.mxu0 %v1035
        %v1112 = vpop.f32.mrf.mxu0
        %v1113 = vadd.f32 %v747, %v1112
        %v1114 = vpop.f32.mrf.mxu0
        %v1115 = vadd.f32 %v752, %v1114
        %1116 = vmatmul.bf16.gmra.mxu0 %v1036
        %v1117 = vpop.f32.mrf.mxu0
        %v1118 = vadd.f32 %v757, %v1117
        %v1119 = vpop.f32.mrf.mxu0
        %v1120 = vadd.f32 %v762, %v1119
        %1121 = vmatmul.bf16.gmra.mxu0 %v1037
        %v1122 = vpop.f32.mrf.mxu0
        %v1123 = vadd.f32 %v767, %v1122
        %v1124 = vpop.f32.mrf.mxu0
        %v1125 = vadd.f32 %v772, %v1124
        %1126 = vmatmul.bf16.gmra.mxu0 %v1038
        %v1127 = vpop.f32.mrf.mxu0
        %v1128 = vadd.f32 %v777, %v1127
        %v1129 = vpop.f32.mrf.mxu0
        %v1130 = vadd.f32 %v782, %v1129
        %1131 = vmatmul.bf16.gmra.mxu0 %v1039
        %v1132 = vpop.f32.mrf.mxu0
        %v1133 = vadd.f32 %v787, %v1132
        %v1134 = vpop.f32.mrf.mxu0
        %v1135 = vadd.f32 %v792, %v1134
        %1136 = vmatmul.bf16.gmra.mxu0 %v1040
        %v1137 = vpop.f32.mrf.mxu0
        %v1138 = vadd.f32 %v797, %v1137
        %v1139 = vpop.f32.mrf.mxu0
        %v1140 = vadd.f32 %v802, %v1139
        %1141 = vmatmul.bf16.gmra.mxu0 %v1041
        %v1142 = vpop.f32.mrf.mxu0
        %v1143 = vadd.f32 %v807, %v1142
        %v1144 = vpop.f32.mrf.mxu0
        %v1145 = vadd.f32 %v812, %v1144
        %1146 = vmatmul.bf16.gmra.mxu0 %v1042
        %v1147 = vpop.f32.mrf.mxu0
        %v1148 = vadd.f32 %v817, %v1147
        %v1149 = vpop.f32.mrf.mxu0
        %v1150 = vadd.f32 %v822, %v1149
        %1151 = vmatmul.bf16.gmra.mxu0 %v1043
        %v1152 = vpop.f32.mrf.mxu0
        %v1153 = vadd.f32 %v827, %v1152
        %v1154 = vpop.f32.mrf.mxu0
        %v1155 = vadd.f32 %v832, %v1154
        %1156 = vmatmul.bf16.gmra.mxu0 %v1044
        %v1157 = vpop.f32.mrf.mxu0
        %v1158 = vadd.f32 %v837, %v1157
        %v1159 = vpop.f32.mrf.mxu0
        %v1160 = vadd.f32 %v842, %v1159
        %1161 = vmatmul.bf16.gmra.mxu0 %v1045
        %v1162 = vpop.f32.mrf.mxu0
        %v1163 = vadd.f32 %v847, %v1162
        %v1164 = vpop.f32.mrf.mxu0
        %v1165 = vadd.f32 %v852, %v1164
        %1166 = vmatmul.bf16.gmra.mxu0 %v1046
        %v1167 = vpop.f32.mrf.mxu0
        %v1168 = vadd.f32 %v857, %v1167
        %v1169 = vpop.f32.mrf.mxu0
        %v1170 = vadd.f32 %v862, %v1169
        %1171 = vmatmul.bf16.gmra.mxu0 %v1047
        %v1172 = vpop.f32.mrf.mxu0
        %v1173 = vadd.f32 %v867, %v1172
        %v1174 = vpop.f32.mrf.mxu0
        %v1175 = vadd.f32 %v872, %v1174
        %1176 = vmatmul.bf16.gmra.mxu0 %v1048
        %v1177 = vpop.f32.mrf.mxu0
        %v1178 = vadd.f32 %v877, %v1177
        %v1179 = vpop.f32.mrf.mxu0
        %v1180 = vadd.f32 %v882, %v1179
        %1181 = vmatmul.bf16.gmra.mxu0 %v1049
        %v1182 = vpop.f32.mrf.mxu0
        %v1183 = vadd.f32 %v887, %v1182
        %v1184 = vpop.f32.mrf.mxu0
        %v1185 = vadd.f32 %v892, %v1184
        %1186 = vmatmul.bf16.gmra.mxu0 %v1050
        %v1187 = vpop.f32.mrf.mxu0
        %v1188 = vadd.f32 %v897, %v1187
        %v1189 = vpop.f32.mrf.mxu0
        %v1190 = vadd.f32 %v902, %v1189
        %1191 = vmatmul.bf16.gmra.mxu0 %v1051
        %v1192 = vpop.f32.mrf.mxu0
        %v1193 = vadd.f32 %v907, %v1192
        %v1194 = vpop.f32.mrf.mxu0
        %v1195 = vadd.f32 %v912, %v1194
        %1196 = vmatmul.bf16.gmra.mxu0 %v1052
        %v1197 = vpop.f32.mrf.mxu0
        %v1198 = vadd.f32 %v917, %v1197
        %v1199 = vpop.f32.mrf.mxu0
        %v1200 = vadd.f32 %v922, %v1199
        %1201 = vmatmul.bf16.gmra.mxu0 %v1053
        %v1202 = vpop.f32.mrf.mxu0
        %v1203 = vadd.f32 %v927, %v1202
        %v1204 = vpop.f32.mrf.mxu0
        %v1205 = vadd.f32 %v932, %v1204
        %1206 = vdwg.mxu0
        %1207 = vmatpush.bf16.msra.mxu0 %v597
        %1208 = vmatpush.bf16.msra.mxu0 %v595
        %1209 = vmatpush.bf16.msra.mxu0 %v593
        %1210 = vmatpush.bf16.msra.mxu0 %v591
        %1211 = vmatpush.bf16.msra.mxu0 %v589
        %1212 = vmatpush.bf16.msra.mxu0 %v587
        %1213 = vmatpush.bf16.msra.mxu0 %v585
        %1214 = vmatpush.bf16.msra.mxu0 %v583
        %1215 = vmatmul.bf16.gmra.mxu0 %v1030
        %v1216 = vpop.f32.mrf.mxu0
        %v1217 = vadd.f32 %v697, %v1216
        %v1218 = vpop.f32.mrf.mxu0
        %v1219 = vadd.f32 %v702, %v1218
        %1220 = vmatmul.bf16.gmra.mxu0 %v1031
        %v1221 = vpop.f32.mrf.mxu0
        %v1222 = vadd.f32 %v707, %v1221
        %v1223 = vpop.f32.mrf.mxu0
        %v1224 = vadd.f32 %v712, %v1223
        %1225 = vmatmul.bf16.gmra.mxu0 %v1032
        %v1226 = vpop.f32.mrf.mxu0
        %v1227 = vadd.f32 %v717, %v1226
        %v1228 = vpop.f32.mrf.mxu0
        %v1229 = vadd.f32 %v722, %v1228
        %1230 = vmatmul.bf16.gmra.mxu0 %v1033
        %v1231 = vpop.f32.mrf.mxu0
        %v1232 = vadd.f32 %v727, %v1231
        %v1233 = vpop.f32.mrf.mxu0
        %v1234 = vadd.f32 %v732, %v1233
        %1235 = vmatmul.bf16.gmra.mxu0 %v1034
        %v1236 = vpop.f32.mrf.mxu0
        %v1237 = vadd.f32 %v737, %v1236
        %v1238 = vpop.f32.mrf.mxu0
        %v1239 = vadd.f32 %v742, %v1238
        %1240 = vmatmul.bf16.gmra.mxu0 %v1035
        %v1241 = vpop.f32.mrf.mxu0
        %v1242 = vadd.f32 %v747, %v1241
        %v1243 = vpop.f32.mrf.mxu0
        %v1244 = vadd.f32 %v752, %v1243
        %1245 = vmatmul.bf16.gmra.mxu0 %v1036
        %v1246 = vpop.f32.mrf.mxu0
        %v1247 = vadd.f32 %v757, %v1246
        %v1248 = vpop.f32.mrf.mxu0
        %v1249 = vadd.f32 %v762, %v1248
        %1250 = vmatmul.bf16.gmra.mxu0 %v1037
        %v1251 = vpop.f32.mrf.mxu0
        %v1252 = vadd.f32 %v767, %v1251
        %v1253 = vpop.f32.mrf.mxu0
        %v1254 = vadd.f32 %v772, %v1253
        %1255 = vmatmul.bf16.gmra.mxu0 %v1038
        %v1256 = vpop.f32.mrf.mxu0
        %v1257 = vadd.f32 %v777, %v1256
        %v1258 = vpop.f32.mrf.mxu0
        %v1259 = vadd.f32 %v782, %v1258
        %1260 = vmatmul.bf16.gmra.mxu0 %v1039
        %v1261 = vpop.f32.mrf.mxu0
        %v1262 = vadd.f32 %v787, %v1261
        %v1263 = vpop.f32.mrf.mxu0
        %v1264 = vadd.f32 %v792, %v1263
        %1265 = vmatmul.bf16.gmra.mxu0 %v1040
        %v1266 = vpop.f32.mrf.mxu0
        %v1267 = vadd.f32 %v797, %v1266
        %v1268 = vpop.f32.mrf.mxu0
        %v1269 = vadd.f32 %v802, %v1268
        %1270 = vmatmul.bf16.gmra.mxu0 %v1041
        %v1271 = vpop.f32.mrf.mxu0
        %v1272 = vadd.f32 %v807, %v1271
        %v1273 = vpop.f32.mrf.mxu0
        %v1274 = vadd.f32 %v812, %v1273
        %1275 = vmatmul.bf16.gmra.mxu0 %v1042
        %v1276 = vpop.f32.mrf.mxu0
        %v1277 = vadd.f32 %v817, %v1276
        %v1278 = vpop.f32.mrf.mxu0
        %v1279 = vadd.f32 %v822, %v1278
        %1280 = vmatmul.bf16.gmra.mxu0 %v1043
        %v1281 = vpop.f32.mrf.mxu0
        %v1282 = vadd.f32 %v827, %v1281
        %v1283 = vpop.f32.mrf.mxu0
        %v1284 = vadd.f32 %v832, %v1283
        %1285 = vmatmul.bf16.gmra.mxu0 %v1044
        %v1286 = vpop.f32.mrf.mxu0
        %v1287 = vadd.f32 %v837, %v1286
        %v1288 = vpop.f32.mrf.mxu0
        %v1289 = vadd.f32 %v842, %v1288
        %1290 = vmatmul.bf16.gmra.mxu0 %v1045
        %v1291 = vpop.f32.mrf.mxu0
        %v1292 = vadd.f32 %v847, %v1291
        %v1293 = vpop.f32.mrf.mxu0
        %v1294 = vadd.f32 %v852, %v1293
        %1295 = vmatmul.bf16.gmra.mxu0 %v1046
        %v1296 = vpop.f32.mrf.mxu0
        %v1297 = vadd.f32 %v857, %v1296
        %v1298 = vpop.f32.mrf.mxu0
        %v1299 = vadd.f32 %v862, %v1298
        %1300 = vmatmul.bf16.gmra.mxu0 %v1047
        %v1301 = vpop.f32.mrf.mxu0
        %v1302 = vadd.f32 %v867, %v1301
        %v1303 = vpop.f32.mrf.mxu0
        %v1304 = vadd.f32 %v872, %v1303
        %1305 = vmatmul.bf16.gmra.mxu0 %v1048
        %v1306 = vpop.f32.mrf.mxu0
        %v1307 = vadd.f32 %v877, %v1306
        %v1308 = vpop.f32.mrf.mxu0
        %v1309 = vadd.f32 %v882, %v1308
        %1310 = vmatmul.bf16.gmra.mxu0 %v1049
        %v1311 = vpop.f32.mrf.mxu0
        %v1312 = vadd.f32 %v887, %v1311
        %v1313 = vpop.f32.mrf.mxu0
        %v1314 = vadd.f32 %v892, %v1313
        %1315 = vmatmul.bf16.gmra.mxu0 %v1050
        %v1316 = vpop.f32.mrf.mxu0
        %v1317 = vadd.f32 %v897, %v1316
        %v1318 = vpop.f32.mrf.mxu0
        %v1319 = vadd.f32 %v902, %v1318
        %1320 = vmatmul.bf16.gmra.mxu0 %v1051
        %v1321 = vpop.f32.mrf.mxu0
        %v1322 = vadd.f32 %v907, %v1321
        %v1323 = vpop.f32.mrf.mxu0
        %v1324 = vadd.f32 %v912, %v1323
        %1325 = vmatmul.bf16.gmra.mxu0 %v1052
        %v1326 = vpop.f32.mrf.mxu0
        %v1327 = vadd.f32 %v917, %v1326
        %v1328 = vpop.f32.mrf.mxu0
        %v1329 = vadd.f32 %v922, %v1328
        %1330 = vmatmul.bf16.gmra.mxu0 %v1053
        %v1331 = vpop.f32.mrf.mxu0
        %v1332 = vadd.f32 %v927, %v1331
        %v1333 = vpop.f32.mrf.mxu0
        %v1334 = vadd.f32 %v932, %v1333
        %1335 = vdwg.mxu0
        %v1336 = vpack.c.bf16 %v1217, %v1088
        %v1337 = vpack.c.bf16 %v1219, %v1090
        %v1338 = vpack.c.bf16 %v1222, %v1093
        %v1339 = vpack.c.bf16 %v1224, %v1095
        %v1340 = vpack.c.bf16 %v1227, %v1098
        %v1341 = vpack.c.bf16 %v1229, %v1100
        %v1342 = vpack.c.bf16 %v1232, %v1103
        %v1343 = vpack.c.bf16 %v1234, %v1105
        %v1344 = vpack.c.bf16 %v1237, %v1108
        %v1345 = vpack.c.bf16 %v1239, %v1110
        %v1346 = vpack.c.bf16 %v1242, %v1113
        %v1347 = vpack.c.bf16 %v1244, %v1115
        %v1348 = vpack.c.bf16 %v1247, %v1118
        %v1349 = vpack.c.bf16 %v1249, %v1120
        %v1350 = vpack.c.bf16 %v1252, %v1123
        %v1351 = vpack.c.bf16 %v1254, %v1125
        %v1352 = vpack.c.bf16 %v1257, %v1128
        %v1353 = vpack.c.bf16 %v1259, %v1130
        %v1354 = vpack.c.bf16 %v1262, %v1133
        %v1355 = vpack.c.bf16 %v1264, %v1135
        %v1356 = vpack.c.bf16 %v1267, %v1138
        %v1357 = vpack.c.bf16 %v1269, %v1140
        %v1358 = vpack.c.bf16 %v1272, %v1143
        %v1359 = vpack.c.bf16 %v1274, %v1145
        %v1360 = vpack.c.bf16 %v1277, %v1148
        %v1361 = vpack.c.bf16 %v1279, %v1150
        %v1362 = vpack.c.bf16 %v1282, %v1153
        %v1363 = vpack.c.bf16 %v1284, %v1155
        %v1364 = vpack.c.bf16 %v1287, %v1158
        %v1365 = vpack.c.bf16 %v1289, %v1160
        %v1366 = vpack.c.bf16 %v1292, %v1163
        %v1367 = vpack.c.bf16 %v1294, %v1165
        %v1368 = vpack.c.bf16 %v1297, %v1168
        %v1369 = vpack.c.bf16 %v1299, %v1170
        %v1370 = vpack.c.bf16 %v1302, %v1173
        %v1371 = vpack.c.bf16 %v1304, %v1175
        %v1372 = vpack.c.bf16 %v1307, %v1178
        %v1373 = vpack.c.bf16 %v1309, %v1180
        %v1374 = vpack.c.bf16 %v1312, %v1183
        %v1375 = vpack.c.bf16 %v1314, %v1185
        %v1376 = vpack.c.bf16 %v1317, %v1188
        %v1377 = vpack.c.bf16 %v1319, %v1190
        %v1378 = vpack.c.bf16 %v1322, %v1193
        %v1379 = vpack.c.bf16 %v1324, %v1195
        %v1380 = vpack.c.bf16 %v1327, %v1198
        %v1381 = vpack.c.bf16 %v1329, %v1200
        %v1382 = vpack.c.bf16 %v1332, %v1203
        %v1383 = vpack.c.bf16 %v1334, %v1205
        %1384 = vst [vmem:[%s272] sm:$0xff] %v1336
        %1385 = vst [vmem:[%s272 + $0x8] sm:$0xff] %v1337
        %1386 = vst [vmem:[%s272 + $0x10] sm:$0xff] %v1338
        %1387 = vst [vmem:[%s272 + $0x18] sm:$0xff] %v1339
        %1388 = vst [vmem:[%s272 + $0x20] sm:$0xff] %v1340
        %1389 = vst [vmem:[%s272 + $0x28] sm:$0xff] %v1341
        %1390 = vst [vmem:[%s272 + $0x30] sm:$0xff] %v1342
        %1391 = vst [vmem:[%s272 + $0x38] sm:$0xff] %v1343
        %1392 = vst [vmem:[%s272 + $0x40] sm:$0xff] %v1344
        %1393 = vst [vmem:[%s272 + $0x48] sm:$0xff] %v1345
        %1394 = vst [vmem:[%s272 + $0x50] sm:$0xff] %v1346
        %1395 = vst [vmem:[%s272 + $0x58] sm:$0xff] %v1347
        %1396 = vst [vmem:[%s272 + $0x60] sm:$0xff] %v1348
        %1397 = vst [vmem:[%s272 + $0x68] sm:$0xff] %v1349
        %1398 = vst [vmem:[%s272 + $0x70] sm:$0xff] %v1350
        %1399 = vst [vmem:[%s272 + $0x78] sm:$0xff] %v1351
        %1400 = vst [vmem:[%s272 + $0x80] sm:$0xff] %v1352
        %1401 = vst [vmem:[%s272 + $0x88] sm:$0xff] %v1353
        %1402 = vst [vmem:[%s272 + $0x90] sm:$0xff] %v1354
        %1403 = vst [vmem:[%s272 + $0x98] sm:$0xff] %v1355
        %1404 = vst [vmem:[%s272 + $0xa0] sm:$0xff] %v1356
        %1405 = vst [vmem:[%s272 + $0xa8] sm:$0xff] %v1357
        %1406 = vst [vmem:[%s272 + $0xb0] sm:$0xff] %v1358
        %1407 = vst [vmem:[%s272 + $0xb8] sm:$0xff] %v1359
        %1408 = vst [vmem:[%s272 + $0xc0] sm:$0xff] %v1360
        %1409 = vst [vmem:[%s272 + $0xc8] sm:$0xff] %v1361
        %1410 = vst [vmem:[%s272 + $0xd0] sm:$0xff] %v1362
        %1411 = vst [vmem:[%s272 + $0xd8] sm:$0xff] %v1363
        %1412 = vst [vmem:[%s272 + $0xe0] sm:$0xff] %v1364
        %1413 = vst [vmem:[%s272 + $0xe8] sm:$0xff] %v1365
        %1414 = vst [vmem:[%s272 + $0xf0] sm:$0xff] %v1366
        %1415 = vst [vmem:[%s272 + $0xf8] sm:$0xff] %v1367
        %1416 = vst [vmem:[%s272 + $0x100] sm:$0xff] %v1368
        %1417 = vst [vmem:[%s272 + $0x108] sm:$0xff] %v1369
        %1418 = vst [vmem:[%s272 + $0x110] sm:$0xff] %v1370
        %1419 = vst [vmem:[%s272 + $0x118] sm:$0xff] %v1371
        %1420 = vst [vmem:[%s272 + $0x120] sm:$0xff] %v1372
        %1421 = vst [vmem:[%s272 + $0x128] sm:$0xff] %v1373
        %1422 = vst [vmem:[%s272 + $0x130] sm:$0xff] %v1374
        %1423 = vst [vmem:[%s272 + $0x138] sm:$0xff] %v1375
        %1424 = vst [vmem:[%s272 + $0x140] sm:$0xff] %v1376
        %1425 = vst [vmem:[%s272 + $0x148] sm:$0xff] %v1377
        %1426 = vst [vmem:[%s272 + $0x150] sm:$0xff] %v1378
        %1427 = vst [vmem:[%s272 + $0x158] sm:$0xff] %v1379
        %1428 = vst [vmem:[%s272 + $0x160] sm:$0xff] %v1380
        %1429 = vst [vmem:[%s272 + $0x168] sm:$0xff] %v1381
        %1430 = vst [vmem:[%s272 + $0x170] sm:$0xff] %v1382
        %1431 = vst [vmem:[%s272 + $0x178] sm:$0xff] %v1383
        %s1432 = sand.u32 %s163, 1
        %s1433 = scalar_lea.sflag [#allocation3], %s1432
        %s1434 = sand.u32 %s163, 1
        %s1435 = smul.addr %s1434, 384
        %s1436 = scalar_lea.vmem [#allocation2], %s1435
        // Predicated region
        $region41: #{tpu_custom_call.1} parent=39 // pred_check
          %p1437 = pneg %p173
        $region42: #{tpu_custom_call.1} parent=39 // pred_check_branch
          %1439 = sbr.rel (%p1437) target = $region44
        $region43: #{tpu_custom_call.1} parent=39 // pred_region
          %s1440 = smul.u32 2, %s24
          %1442 = vsyncadd %s1433, 0
          %s1443 = smul.addr %s23, 96
          %s1444 = sadd.s32 %s1440, %s1443
          %s1445 = smul.addr %s1444, 4
          %s1446 = scalar_lea.hbm %s5, %s1445
          %s1447 = sshll.u32 %s1436, 4
          %s1448 = int_to_ptr.vmem [resolvable:$true] %s1447
          %s1449 = sshll.u32 %s1446, 4
          %s1450 = int_to_ptr.hbm [resolvable:$true] %s1449
          %1455 = dma.vmem_to_hbm [thread:$0]  %s1448, 6144, %s1450, %s1433, 128, 128, 8
        $region44: #{tpu_custom_call.1} parent=39 // pred_fallthru
          _
      $region40: #{tpu_custom_call.1} parent=5 // pred_fallthru
        _
      %p1456 = scmp.le.s32.totalorder 2, %s14
      // Predicated region
      $region45: #{tpu_custom_call.1} parent=5 // pred_check
        %p1457 = pneg %p1456
      $region46: #{tpu_custom_call.1} parent=5 // pred_check_branch
        %1459 = sbr.rel (%p1457) target = $region48
      $region47: #{tpu_custom_call.1} parent=5 // pred_region
        %s1460 = ssub.s32 %s14, 2
        // Predicated region
        $region49: #{tpu_custom_call.1} parent=47 // pred_check
          %p1461 = pneg %p179
        $region50: #{tpu_custom_call.1} parent=47 // pred_check_branch
          %1463 = sbr.rel (%p1461) target = $region52
        $region51: #{tpu_custom_call.1} parent=47 // pred_region
          %s1464 = sand.u32 %s164, 1
          %s1465 = scalar_lea.sflag [#allocation3], %s1464
          %s1466 = sand.u32 %s164, 1
          %s1467 = smul.addr %s1466, 384
          %s1468 = scalar_lea.vmem [#allocation2], %s1467
          %1470 = dma.done %s1465, 6144
        $region52: #{tpu_custom_call.1} parent=47 // pred_fallthru
          _
      $region48: #{tpu_custom_call.1} parent=5 // pred_fallthru
        _
    $region6: #{tpu_custom_call.1} parent=1 // loop_footer
      %s18 = sadd.s32 1, %s14
    $region7: #{tpu_custom_call.1} parent=1 // loop_footer_branch
      %13 = sbr.rel target = $region3
    $region8: #{tpu_custom_call.1} parent=1 // loop_exit
      _
    %1471 = vsyncpa [#allocation3], 1
    %s1472 = scalar_lea.sflag [#allocation3], 1
    %1473 = vsyncpa %s1472, 1

</llo_original>
